<compile_context>
chip_gen: v5e
topology: v5e:2x2
jax: 0.10.0
libtpu: 0.0.40
codegen_flags: <defaults>
</compile_context>

<pallas_src>
import jax
import jax.numpy as jnp
from jax.experimental import pallas as pl
from jax.experimental.pallas import tpu as pltpu


def _tsl_kernel(x_ref, g_ref, h_ref, o_ref):
    # x_ref: (TB, m)      block of input rows
    # g_ref: (m, m)       G = A^T A (shared across all grid steps)
    # h_ref: (TB, ts, m)  block of history matrices
    # o_ref: (TB, m)      output rows
    xb = x_ref[...]                                              # (TB, m)
    G = g_ref[...]                                               # (m, m)
    Hb = h_ref[...]                                              # (TB, ts, m)

    # xx_row = x_row @ (A^T A)   (single MXU matmul replaces the A / A^T pair)
    xx = jnp.dot(xb, G, preferred_element_type=jnp.float32)      # (TB, m)

    # s[b, t] = <H[b, t, :], xx[b, :]>  -- batched matvec as multiply+reduce
    s = jnp.sum(Hb * xx[:, None, :], axis=-1)                    # (TB, ts)

    # c[b, d] = sum_t s[b, t] * H[b, t, d]
    c = jnp.sum(Hb * s[:, :, None], axis=1)                      # (TB, m)

    o_ref[...] = c.astype(o_ref.dtype)


def _pick_tb(B, ts, m, tb, vmem_budget_bytes=24 << 20):
    """Largest batch tile that fits the VMEM budget (double-buffered)."""
    per_row_bytes = 4 * (m + ts * m + m)          # x block + H block + out block
    max_rows = (vmem_budget_bytes - 4 * m * m) // (2 * per_row_bytes)
    TB = min(tb, B, max(8, int(max_rows)))
    if TB < B:
        TB = max(8, (TB // 8) * 8)                # sublane-align partial tiles
    return TB


def tsl_net_forward(x, A, H, *, tb=1024):
    """x: (B, m) f32, A: (m, m) f32, H: (B, ts, m) f32 -> c: (B, 1, m) f32."""
    B, m = x.shape
    _, ts, _ = H.shape

    # Algebraic fusion of the inner chain: A^T (A x) == (A^T A) x.
    G = jnp.dot(A.T, A, preferred_element_type=jnp.float32)      # (m, m)

    TB = _pick_tb(B, ts, m, tb)
    B_pad = pl.cdiv(B, TB) * TB
    if B_pad != B:
        x = jnp.pad(x, ((0, B_pad - B), (0, 0)))
        H = jnp.pad(H, ((0, B_pad - B), (0, 0), (0, 0)))

    grid = (B_pad // TB,)
    flops = B_pad * (2 * m * m + 4 * ts * m)
    bytes_accessed = (B_pad * (2 * m + ts * m) + m * m) * 4

    out = pl.pallas_call(
        _tsl_kernel,
        out_shape=jax.ShapeDtypeStruct((B_pad, m), x.dtype),
        grid_spec=pltpu.PrefetchScalarGridSpec(
            num_scalar_prefetch=0,
            grid=grid,
            in_specs=[
                pl.BlockSpec((TB, m), lambda b: (b, 0)),
                pl.BlockSpec((m, m), lambda b: (0, 0)),
                pl.BlockSpec((TB, ts, m), lambda b: (b, 0, 0)),
            ],
            out_specs=pl.BlockSpec((TB, m), lambda b: (b, 0)),
        ),
        compiler_params=pltpu.CompilerParams(
            dimension_semantics=("parallel",),
        ),
        cost_estimate=pl.CostEstimate(
            flops=flops, transcendentals=0, bytes_accessed=bytes_accessed
        ),
    )(x, G, H)

    # Slice off padding and match PyTorch output shape (B, 1, m).
    return out[:B].reshape(B, 1, m)


def tsl_net_reference(x, A, H):
    """Plain-JAX reference mirroring the PyTorch forward exactly."""
    B, m = x.shape
    x_col = x.reshape(B, m, 1)                           # (B, m, 1)
    A_b = A[None]                                        # (1, m, m) broadcast
    ax = jnp.matmul(A_b, x_col)                          # (B, m, 1)
    xx = jnp.matmul(jnp.transpose(A_b, (0, 2, 1)), ax)   # (B, m, 1)
    a = jnp.transpose(jnp.matmul(H, xx), (0, 2, 1))      # (B, 1, ts)
    c = jnp.matmul(a, H)                                 # (B, 1, m)
    return c


def _run_case(key, B, ts, m, tb):
    k_x, k_h, k_a = jax.random.split(key, 3)
    x = jax.random.normal(k_x, (B, m), dtype=jnp.float32)
    H = jax.random.normal(k_h, (B, ts, m), dtype=jnp.float32)
    std_dev = jnp.sqrt(2.0 / (m + m))
    A = (jax.random.normal(k_a, (m, m), dtype=jnp.float32) * std_dev).astype(
        jnp.float32
    )

    c = tsl_net_forward(x, A, H, tb=tb)
    c = jax.block_until_ready(c)
    c_ref = tsl_net_reference(x, A, H)

    assert c.shape == (B, 1, m), f"bad output shape {c.shape}"
    assert jnp.allclose(c, c_ref, rtol=1e-4, atol=1e-4), "mismatch vs reference"


if __name__ == "__main__":
    key = jax.random.PRNGKey(0)
    k1, k2 = jax.random.split(key)

    # Small case: single full-batch tile (B=2, ts=8, m=32 = ln_top[-1]).
    _run_case(k1, B=2, ts=8, m=32, tb=1024)

    # Case exercising the tiled/padded multi-block path (B=20 -> pad to 24, TB=8).
    _run_case(k2, B=20, ts=8, m=32, tb=8)

    print("KERNEL_OK")
</pallas_src>

<mosaic_0001>
module attributes {stable_mosaic.version = 11 : i64} {
  func.func @_tsl_kernel(%arg0: i32, %arg1: memref<2x32xf32, #tpu.memory_space<vmem>>, %arg2: memref<32x32xf32, #tpu.memory_space<vmem>>, %arg3: memref<2x8x32xf32, #tpu.memory_space<vmem>>, %arg4: memref<2x32xf32, #tpu.memory_space<vmem>>) attributes {dimension_semantics = [#tpu.dimension_semantics<parallel>], iteration_bounds = array<i64: 1>, scalar_prefetch = 0 : i64, scratch_operands = 0 : i64, tpu.core_type = #tpu.core_type<tc>, window_params = [{transform_indices = @transform_0, window_bounds = array<i64: 2, 32>}, {pipeline_mode = #tpu.pipeline_mode<synchronous>, transform_indices = @transform_1, window_bounds = array<i64: 32, 32>}, {transform_indices = @transform_2, window_bounds = array<i64: 2, 8, 32>}, {transform_indices = @transform_3, window_bounds = array<i64: 2, 32>}]} {
    %c0 = arith.constant 0 : index
    %c0_0 = arith.constant 0 : index
    %0 = vector.load %arg1[%c0, %c0_0] : memref<2x32xf32, #tpu.memory_space<vmem>>, vector<2x32xf32>
    %c0_1 = arith.constant 0 : index
    %c0_2 = arith.constant 0 : index
    %1 = vector.load %arg2[%c0_1, %c0_2] : memref<32x32xf32, #tpu.memory_space<vmem>>, vector<32x32xf32>
    %c0_3 = arith.constant 0 : index
    %c0_4 = arith.constant 0 : index
    %c0_5 = arith.constant 0 : index
    %2 = vector.load %arg3[%c0_3, %c0_4, %c0_5] : memref<2x8x32xf32, #tpu.memory_space<vmem>>, vector<2x8x32xf32>
    %cst = arith.constant dense<0.000000e+00> : vector<2x32xf32>
    %3 = tpu.matmul %0, %1, %cst {dimension_numbers = #tpu.dot_dimension_numbers<[1], [0], [0], [1], [0, 0, 1, 1], [], []>} : vector<2x32xf32>, vector<32x32xf32>, vector<2x32xf32> -> vector<2x32xf32>
    %4 = vector.shape_cast %3 : vector<2x32xf32> to vector<2x1x32xf32>
    %5 = vector.broadcast %4 : vector<2x1x32xf32> to vector<2x8x32xf32>
    %6 = arith.mulf %2, %5 : vector<2x8x32xf32>
    %cst_6 = arith.constant dense<0.000000e+00> : vector<2x8xf32>
    %7 = vector.multi_reduction <add>, %6, %cst_6 [2] : vector<2x8x32xf32> to vector<2x8xf32>
    %8 = vector.shape_cast %7 : vector<2x8xf32> to vector<2x8x1xf32>
    %9 = vector.broadcast %8 : vector<2x8x1xf32> to vector<2x8x32xf32>
    %10 = arith.mulf %2, %9 : vector<2x8x32xf32>
    %cst_7 = arith.constant dense<0.000000e+00> : vector<2x32xf32>
    %11 = vector.multi_reduction <add>, %10, %cst_7 [1] : vector<2x8x32xf32> to vector<2x32xf32>
    %c0_8 = arith.constant 0 : index
    %c0_9 = arith.constant 0 : index
    %12 = vector.load %arg4[%c0_8, %c0_9] : memref<2x32xf32, #tpu.memory_space<vmem>>, vector<2x32xf32>
    tpu.vector_store %arg4[%c0_8, %c0_9], %11 {strides = array<i32>} : memref<2x32xf32, #tpu.memory_space<vmem>>, vector<2x32xf32>,
    return
  }
  func.func @transform_0(%arg0: i32) -> (i32, i32) {
    %c0_i32 = arith.constant 0 : i32
    %c0_i32_0 = arith.constant 0 : i32
    return %arg0, %c0_i32 : i32, i32
  }
  func.func @transform_1(%arg0: i32) -> (i32, i32) {
    %c0_i32 = arith.constant 0 : i32
    %c0_i32_0 = arith.constant 0 : i32
    %c0_i32_1 = arith.constant 0 : i32
    return %c0_i32, %c0_i32_0 : i32, i32
  }
  func.func @transform_2(%arg0: i32) -> (i32, i32, i32) {
    %c0_i32 = arith.constant 0 : i32
    %c0_i32_0 = arith.constant 0 : i32
    %c0_i32_1 = arith.constant 0 : i32
    return %arg0, %c0_i32, %c0_i32_0 : i32, i32, i32
  }
  func.func @transform_3(%arg0: i32) -> (i32, i32) {
    %c0_i32 = arith.constant 0 : i32
    %c0_i32_0 = arith.constant 0 : i32
    return %arg0, %c0_i32 : i32, i32
  }
}

</mosaic_0001>

<llo_original>
// kernel: tpu_custom_call.1
$region0: #{tpu_custom_call.1}
  #allocation0 [shape = 'u32[]', space=smem, size = 0x4, offset = 0x4, fixed_abs, tag = 'smem constant byte address 0x4 - core index']
  #allocation1 [shape = 'u32[72,128]{1,0:T(1,128)}', space=vmem, size = 0x9000, scoped, tag = 'internal scratch']
  %s0 = inlined_call_operand.hbm [shape: f32[2,32], index: 0, kind: input, shape index: {}]
  %s1 = inlined_call_operand.hbm [shape: f32[32,32], index: 1, kind: input, shape index: {}]
  %s2 = inlined_call_operand.hbm [shape: f32[2,8,32], index: 2, kind: input, shape index: {}]
  %s3 = inlined_call_operand.hbm [shape: f32[2,32], index: 3, kind: output, shape index: {}]
  %s4 = sld [smem:[#allocation0]]
  $region34: #{tpu_custom_call.1} parent=0
    _
  %s6 = ssub.s32 1, %s4
  %s7 = scalar_select 0, %s6, %s4
  $region1: #{tpu_custom_call.1} parent=0
    #allocation2 [shape = 'u8[1024]{0}', space=vmem, size = 0x400, scoped, tag = 'input window, operand 0, single buffered']
    #allocation3 [shape = 's32[1]{0}', space=sflag, size = 0x4, scoped, tag = 'scoped memory for tpu_custom_call.1']
    #allocation4 [shape = 's32[1]{0}', space=sflag, size = 0x4, scoped, tag = 'scoped memory for tpu_custom_call.1']
    #allocation5 [shape = 'u8[16384]{0}', space=vmem, size = 0x4000, scoped, tag = 'input window, operand 1, single buffered']
    #allocation6 [shape = 's32[1]{0}', space=sflag, size = 0x4, scoped, tag = 'scoped memory for tpu_custom_call.1']
    #allocation7 [shape = 'u8[8192]{0}', space=vmem, size = 0x2000, scoped, tag = 'input window, operand 2, single buffered']
    #allocation8 [shape = 'u8[1024]{0}', space=vmem, size = 0x400, scoped, tag = 'output window, operand 0, single buffered']
    %8 = vsyncpa [#allocation3], 0
    %9 = vsyncpa [#allocation6], 0
    %10 = vsyncpa [#allocation4], 0
    // Predicated region
    $region2: #{tpu_custom_call.1} parent=1 // pred_check
      _
    $region3: #{tpu_custom_call.1} parent=1 // pred_check_branch
      %12 = sbr.rel (0) target = $region5
    $region4: #{tpu_custom_call.1} parent=1 // pred_region
      %14 = vsyncadd [#allocation3], 0
      %s16 = sshll.u32 %s0, 4
      %s17 = int_to_ptr.hbm [resolvable:$true] %s16
      %s18 = sshll.u32 [#allocation2], 4
      %s19 = int_to_ptr.vmem [resolvable:$true] %s18
      %21 = dma.hbm_to_vmem [thread:$0]  %s17, 32, %s19, [#allocation3]
    $region5: #{tpu_custom_call.1} parent=1 // pred_fallthru
      _
    // Predicated region
    $region6: #{tpu_custom_call.1} parent=1 // pred_check
      _
    $region7: #{tpu_custom_call.1} parent=1 // pred_check_branch
      %23 = sbr.rel (0) target = $region9
    $region8: #{tpu_custom_call.1} parent=1 // pred_region
      %25 = vsyncadd [#allocation6], 0
      %s26 = sshll.u32 %s1, 4
      %s27 = int_to_ptr.hbm [resolvable:$true] %s26
      %s28 = sshll.u32 [#allocation5], 4
      %s29 = int_to_ptr.vmem [resolvable:$true] %s28
      %34 = dma.hbm_to_vmem [thread:$0]  %s27, 512, %s29, [#allocation6], 128, 128, 8
    $region9: #{tpu_custom_call.1} parent=1 // pred_fallthru
      _
    // Predicated region
    $region10: #{tpu_custom_call.1} parent=1 // pred_check
      _
    $region11: #{tpu_custom_call.1} parent=1 // pred_check_branch
      %36 = sbr.rel (0) target = $region13
    $region12: #{tpu_custom_call.1} parent=1 // pred_region
      %38 = vsyncadd [#allocation6], 0
      %s39 = sshll.u32 %s2, 4
      %s40 = int_to_ptr.hbm [resolvable:$true] %s39
      %s41 = sshll.u32 [#allocation7], 4
      %s42 = int_to_ptr.vmem [resolvable:$true] %s41
      %47 = dma.hbm_to_vmem [thread:$0]  %s40, 256, %s42, [#allocation6], 128, 128, 8
    $region13: #{tpu_custom_call.1} parent=1 // pred_fallthru
      _
    // Predicated region
    $region14: #{tpu_custom_call.1} parent=1 // pred_check
      _
    $region15: #{tpu_custom_call.1} parent=1 // pred_check_branch
      %49 = sbr.rel (0) target = $region17
    $region16: #{tpu_custom_call.1} parent=1 // pred_region
      %51 = dma.done [#allocation3], 32
    $region17: #{tpu_custom_call.1} parent=1 // pred_fallthru
      _
    // Predicated region
    $region18: #{tpu_custom_call.1} parent=1 // pred_check
      _
    $region19: #{tpu_custom_call.1} parent=1 // pred_check_branch
      %53 = sbr.rel (0) target = $region21
    $region20: #{tpu_custom_call.1} parent=1 // pred_region
      %55 = dma.done [#allocation6], 512
    $region21: #{tpu_custom_call.1} parent=1 // pred_fallthru
      _
    // Predicated region
    $region22: #{tpu_custom_call.1} parent=1 // pred_check
      _
    $region23: #{tpu_custom_call.1} parent=1 // pred_check_branch
      %57 = sbr.rel (0) target = $region25
    $region24: #{tpu_custom_call.1} parent=1 // pred_region
      %59 = dma.done [#allocation6], 256
    $region25: #{tpu_custom_call.1} parent=1 // pred_fallthru
      _
    %v60 = vld [vmem:[#allocation2] sm:$0x3]
    %v61 = vld [vmem:[#allocation5] sm:$0xff]
    %v62 = vld [vmem:[#allocation5 + $0x8] sm:$0xff]
    %v63 = vld [vmem:[#allocation5 + $0x10] sm:$0xff]
    %v64 = vld [vmem:[#allocation5 + $0x18] sm:$0xff]
    %v65 = vld [vmem:[#allocation7] sm:$0xff]
    %v66 = vld [vmem:[#allocation7 + $0x8] sm:$0xff]
    %vm67 = vcmask 261120
    %v69 = vsel %vm67, %v60, 0
    %71 = vmatpush.msra.mxu0 0.0
    %72 = vmatpush.msra.mxu0 0.0
    %73 = vmatpush.msra.mxu0 0.0
    %74 = vmatpush.msra.mxu0 0.0
    %75 = vmatpush.msra.mxu0 0.0
    %76 = vmatpush.msra.mxu0 0.0
    %77 = vmatpush.msra.mxu0 0.0
    %78 = vmatpush.msra.mxu0 0.0
    %79 = vmatpush.msra.mxu0 0.0
    %80 = vmatpush.msra.mxu0 0.0
    %81 = vmatpush.msra.mxu0 0.0
    %82 = vmatpush.msra.mxu0 0.0
    %83 = vmatpush.msra.mxu0 %v64
    %84 = vmatpush.msra.mxu0 %v63
    %85 = vmatpush.msra.mxu0 %v62
    %86 = vmatpush.msra.mxu0 %v61
    %87 = vmatmul.f32.gmra.mxu0 %v69
    %v88 = vpop.f32.mrf.mxu0
    %v89 = vadd.f32 0.0, %v88
    %90 = vdwg.mxu0
    %v92 = vrot.slane %v89, 1
    %v93 = vperm.slane %v89, 0
    %v94 = vperm.slane %v92, 0
    %v97 = vmul.f32 %v65, %v93
    %v98 = vmul.f32 %v66, %v94
    %v99 = vsel %vm67, %v97, 0.0
    %100 = vadd.xlane.f32.xlu0 %v99
    %v101 = vpop.xlane.xlu0 %100
    %v102 = vsel %vm67, %v98, 0.0
    %103 = vadd.xlane.f32.xlu0 %v102
    %v104 = vpop.xlane.xlu0 %103
    %v105 = vmul.f32 %v65, %v101
    %v106 = vmul.f32 %v66, %v104
    %v107 = vsel %vm67, %v105, 0.0
    %v108 = vrot.slane %v107, 4
    %v109 = vadd.f32 %v107, %v108
    %v110 = vrot.slane %v109, 2
    %v111 = vadd.f32 %v109, %v110
    %v112 = vrot.slane %v111, 1
    %v113 = vadd.f32 %v111, %v112
    %v114 = vsel %vm67, %v106, 0.0
    %v115 = vrot.slane %v114, 4
    %v116 = vadd.f32 %v114, %v115
    %v117 = vrot.slane %v116, 2
    %v118 = vadd.f32 %v116, %v117
    %v119 = vrot.slane %v118, 1
    %v120 = vadd.f32 %v118, %v119
    %vm123 = vcmask 1041409
    %v124 = vsel %vm123, %v120, %v113
    %vm126 = vcmask 254976
    %127 = vst.msk [vmem:[#allocation8] sm:$0x3] %vm126, %v124
    // Predicated region
    $region26: #{tpu_custom_call.1} parent=1 // pred_check
      _
    $region27: #{tpu_custom_call.1} parent=1 // pred_check_branch
      %129 = sbr.rel (0) target = $region29
    $region28: #{tpu_custom_call.1} parent=1 // pred_region
      %131 = vsyncadd [#allocation4], 0
      %s133 = sshll.u32 [#allocation8], 4
      %s134 = int_to_ptr.vmem [resolvable:$true] %s133
      %s135 = sshll.u32 %s3, 4
      %s136 = int_to_ptr.hbm [resolvable:$true] %s135
      %138 = dma.vmem_to_hbm [thread:$0]  %s134, 32, %s136, [#allocation4]
    $region29: #{tpu_custom_call.1} parent=1 // pred_fallthru
      _
    // Predicated region
    $region30: #{tpu_custom_call.1} parent=1 // pred_check
      _
    $region31: #{tpu_custom_call.1} parent=1 // pred_check_branch
      %140 = sbr.rel (0) target = $region33
    $region32: #{tpu_custom_call.1} parent=1 // pred_region
      %142 = dma.done [#allocation4], 32
    $region33: #{tpu_custom_call.1} parent=1 // pred_fallthru
      _
    %143 = vsyncpa [#allocation3], 1
    %144 = vsyncpa [#allocation6], 1
    %145 = vsyncpa [#allocation4], 1

</llo_original>
